<compile_context>
chip_gen: v6e
topology: v6e:2x2x1
jax: 0.10.0
libtpu: 0.0.40
codegen_flags: <defaults>
</compile_context>

<pallas_src>
import functools

import jax
import jax.numpy as jnp
from jax.experimental import pallas as pl
from jax.experimental.pallas import tpu as pltpu

LANE = 128


# --------------------------------------------------------------------------- kernels
def _graphsage_fused_kernel(a_ref, x_ref, inv_ref, w1s_ref, w1n_ref, b1_ref,
                            w2s_ref, w2n_ref, b2_ref, o_ref):
    """Small-N fast path: both SAGEConv layers fused, everything VMEM-resident."""
    a = a_ref[...].astype(jnp.bfloat16)          # 0/1 -> exact in bf16
    x = x_ref[...]                               # [N, Fp_in] bf16
    inv = inv_ref[...]                           # [N, 1] f32 (exact 1/max(deg,1))

    # ---- layer 1: mean aggregation + (self + neigh) projections + bias + ReLU
    neigh1 = jnp.dot(a, x, preferred_element_type=jnp.float32) * inv
    h = (jnp.dot(x, w1s_ref[...], preferred_element_type=jnp.float32)
         + jnp.dot(neigh1.astype(jnp.bfloat16), w1n_ref[...],
                   preferred_element_type=jnp.float32)
         + b1_ref[...])
    h = jnp.maximum(h, 0.0)
    h_bf = h.astype(jnp.bfloat16)                # stays in VMEM, no HBM trip

    # ---- layer 2: same structure, no ReLU
    neigh2 = jnp.dot(a, h_bf, preferred_element_type=jnp.float32) * inv
    out = (jnp.dot(h_bf, w2s_ref[...], preferred_element_type=jnp.float32)
           + jnp.dot(neigh2.astype(jnp.bfloat16), w2n_ref[...],
                     preferred_element_type=jnp.float32)
           + b2_ref[...])
    o_ref[...] = out.astype(o_ref.dtype)         # lane-dense store


def _sage_layer_tiled_kernel(a_ref, xs_ref, xa_ref, inv_ref, ws_ref, wn_ref, b_ref,
                             o_ref, *, apply_relu):
    """One SAGEConv layer for one row tile of nodes."""
    a = a_ref[...].astype(jnp.bfloat16)                       # int8 0/1 -> bf16 exact
    neigh = jnp.dot(a, xa_ref[...], preferred_element_type=jnp.float32)
    neigh = neigh * inv_ref[...]                              # exact f32 mean
    out = (jnp.dot(xs_ref[...], ws_ref[...], preferred_element_type=jnp.float32)
           + jnp.dot(neigh.astype(jnp.bfloat16), wn_ref[...],
                     preferred_element_type=jnp.float32)
           + b_ref[...])
    if apply_relu:
        out = jnp.maximum(out, 0.0)
    o_ref[...] = out.astype(o_ref.dtype)


# ----------------------------------------------------------------------- small utils
def _round_up(v, m):
    return ((v + m - 1) // m) * m


def _pad2(arr, rows, cols):
    pr, pc = rows - arr.shape[0], cols - arr.shape[1]
    if pr == 0 and pc == 0:
        return arr
    return jnp.pad(arr, ((0, pr), (0, pc)))


def _vmem_budget_bytes():
    """Generation-aware usable-VMEM estimate (v5e/v6e: 128 MiB, v7x: 64 MiB)."""
    cap = None
    try:
        cap = int(getattr(pltpu.get_tpu_info(), "vmem_capacity_bytes", 0)) or None
    except Exception:
        cap = None
    if cap is None:
        cap = 64 * 1024 * 1024          # conservative fallback (v7x-sized)
    # ~15% headroom for Mosaic-internal scratch / double buffers.
    return max(32 * 1024 * 1024, min(int(cap * 0.85), 120 * 1024 * 1024))


def _fused_fits(n, fp_in, fp_h, budget):
    fp = max(fp_in, fp_h)
    total = (2 * n * n                        # bf16 adjacency
             + n * fp_in * 2                  # bf16 features
             + n * fp_h * 6                   # f32 h + bf16 h
             + n * fp * 4                     # f32 neigh temporary
             + 2 * (fp_in + fp_h) * fp_h * 2  # bf16 weights
             + n * fp_h * 4)                  # f32 output
    return total < 0.5 * budget


def _choose_tile_rows(n, fp_in, fp_h, a_itemsize, budget):
    """Largest row tile (512/256/128) whose pipelined footprint fits the budget."""
    fp = max(fp_in, fp_h)
    for tm in (512, 256):
        np_r = _round_up(n, tm)
        foot = (2 * tm * np_r * a_itemsize        # double-buffered A row tile
                + np_r * fp * 2                   # resident features (bf16)
                + 2 * tm * fp * 2                 # double-buffered self tile
                + 2 * tm * fp_h * 4               # double-buffered output tile
                + 2 * (fp_in + fp_h) * fp_h * 2   # resident weights
                + 2 * tm * fp * 4)                # f32 temporaries
        if 4 * tm <= np_r and foot < 0.6 * budget:
            return tm
    return 128


# ------------------------------------------------------------------- layer launchers
def _sage_layer_tiled(a, x, inv_deg, w_self, w_neigh, bias, *, tm, apply_relu,
                      out_dtype, vmem_limit):
    np_r = a.shape[0]
    fp = x.shape[1]
    fp_out = w_self.shape[1]

    kern = functools.partial(_sage_layer_tiled_kernel, apply_relu=apply_relu)
    flops = 2 * np_r * np_r * fp + 4 * np_r * fp * fp_out
    bytes_accessed = (a.size * a.dtype.itemsize
                      + 2 * x.size * x.dtype.itemsize
                      + (w_self.size + w_neigh.size) * 2 + bias.size * 4
                      + np_r * fp_out * jnp.dtype(out_dtype).itemsize)

    return pl.pallas_call(
        kern,
        out_shape=jax.ShapeDtypeStruct((np_r, fp_out), out_dtype),
        grid=(np_r // tm,),
        in_specs=[
            pl.BlockSpec((tm, np_r), lambda i: (i, 0)),      # A row tile (int8)
            pl.BlockSpec((tm, fp), lambda i: (i, 0)),        # self-feature row tile
            pl.BlockSpec((np_r, fp), lambda i: (0, 0)),      # all features (resident)
            pl.BlockSpec((tm, 1), lambda i: (i, 0)),         # inv-degree row tile
            pl.BlockSpec((fp, fp_out), lambda i: (0, 0)),    # W_self (resident)
            pl.BlockSpec((fp, fp_out), lambda i: (0, 0)),    # W_neigh (resident)
            pl.BlockSpec((1, fp_out), lambda i: (0, 0)),     # bias (resident)
        ],
        out_specs=pl.BlockSpec((tm, fp_out), lambda i: (i, 0)),
        compiler_params=pltpu.CompilerParams(
            dimension_semantics=("parallel",),               # megacore on v7x
            vmem_limit_bytes=int(vmem_limit)),
        cost_estimate=pl.CostEstimate(flops=int(flops), transcendentals=0,
                                      bytes_accessed=int(bytes_accessed)),
    )(a, x, x, inv_deg, w_self, w_neigh, bias)


def graphsage_forward(adj, x, params, *, force_tiled=False):
    n = adj.shape[0]
    in_feats = x.shape[1]
    h_feats = params["w1_self"].shape[1]
    fp_in = _round_up(in_feats, LANE)
    fp_h = _round_up(h_feats, LANE)
    budget = _vmem_budget_bytes()

    adj_f32 = adj.astype(jnp.float32)

    # Zero-padded bf16 weights / f32 biases shared by both paths; pad rows/cols are
    # zero so the first h_feats output columns are bit-for-bit unaffected.
    w1s = _pad2(params["w1_self"], fp_in, fp_h).astype(jnp.bfloat16)
    w1n = _pad2(params["w1_neigh"], fp_in, fp_h).astype(jnp.bfloat16)
    w2s = _pad2(params["w2_self"], fp_h, fp_h).astype(jnp.bfloat16)
    w2n = _pad2(params["w2_neigh"], fp_h, fp_h).astype(jnp.bfloat16)
    b1 = _pad2(params["b1"], 1, fp_h).astype(jnp.float32)
    b2 = _pad2(params["b2"], 1, fp_h).astype(jnp.float32)

    if not force_tiled and _fused_fits(n, fp_in, fp_h, budget):
        # -------- small-N fast path: one VMEM-resident pallas_call, both layers.
        a_bf = adj_f32.astype(jnp.bfloat16)                   # 0/1 exact in bf16
        x_p = _pad2(x, n, fp_in).astype(jnp.bfloat16)
        deg = jnp.sum(adj_f32, axis=1, keepdims=True)
        inv_deg = (1.0 / jnp.maximum(deg, 1.0)).astype(jnp.float32)

        flops = (2 * n * n * fp_in + 4 * n * fp_in * fp_h
                 + 2 * n * n * fp_h + 4 * n * fp_h * fp_h)
        bytes_accessed = (a_bf.size * 2 + x_p.size * 2 + inv_deg.size * 4
                          + (w1s.size + w1n.size + w2s.size + w2n.size) * 2
                          + (b1.size + b2.size) * 4 + n * fp_h * 4)

        vmem = pl.BlockSpec(memory_space=pltpu.MemorySpace.VMEM)
        out_p = pl.pallas_call(
            _graphsage_fused_kernel,
            out_shape=jax.ShapeDtypeStruct((n, fp_h), jnp.float32),
            in_specs=[vmem] * 9,
            out_specs=vmem,
            compiler_params=pltpu.CompilerParams(vmem_limit_bytes=int(budget)),
            cost_estimate=pl.CostEstimate(flops=int(flops), transcendentals=0,
                                          bytes_accessed=int(bytes_accessed)),
        )(a_bf, x_p, inv_deg, w1s, w1n, b1, w2s, w2n, b2)
        return out_p[:, :h_feats]

    # -------- general path: two row-tiled, pipelined, parallel-marked pallas_calls.
    tm = _choose_tile_rows(n, fp_in, fp_h, 1, budget)
    np_r = _round_up(n, tm)

    adj_pad = _pad2(adj_f32, np_r, np_r)
    a_i8 = adj_pad.astype(jnp.int8)                           # 0/1 -> half the HBM bytes
    x_p = _pad2(x, np_r, fp_in).astype(jnp.bfloat16)
    deg = jnp.sum(adj_pad, axis=1, keepdims=True)
    inv_deg = (1.0 / jnp.maximum(deg, 1.0)).astype(jnp.float32)

    h = _sage_layer_tiled(a_i8, x_p, inv_deg, w1s, w1n, b1, tm=tm,
                          apply_relu=True, out_dtype=jnp.bfloat16,
                          vmem_limit=budget)
    out_p = _sage_layer_tiled(a_i8, h, inv_deg, w2s, w2n, b2, tm=tm,
                              apply_relu=False, out_dtype=jnp.float32,
                              vmem_limit=budget)
    return out_p[:n, :h_feats]


# ----------------------------------------------------------------------------- setup
def init_params(key, in_feats, h_feats):
    ks = jax.random.split(key, 4)
    scale1 = 1.0 / jnp.sqrt(in_feats)
    scale2 = 1.0 / jnp.sqrt(h_feats)
    return {
        "w1_self":  jax.random.normal(ks[0], (in_feats, h_feats), jnp.float32) * scale1,
        "w1_neigh": jax.random.normal(ks[1], (in_feats, h_feats), jnp.float32) * scale1,
        "b1":       jnp.zeros((1, h_feats), jnp.float32),
        "w2_self":  jax.random.normal(ks[2], (h_feats, h_feats), jnp.float32) * scale2,
        "w2_neigh": jax.random.normal(ks[3], (h_feats, h_feats), jnp.float32) * scale2,
        "b2":       jnp.zeros((1, h_feats), jnp.float32),
    }


def _reference(adj, x, params):
    deg = jnp.maximum(jnp.sum(adj, axis=1, keepdims=True), 1.0)
    neigh1 = (adj @ x) / deg
    h = x @ params["w1_self"] + neigh1 @ params["w1_neigh"] + params["b1"]
    h = jnp.maximum(h, 0.0)
    neigh2 = (adj @ h) / deg
    return h @ params["w2_self"] + neigh2 @ params["w2_neigh"] + params["b2"]


if __name__ == "__main__":
    key = jax.random.PRNGKey(0)
    k_graph, k_feat, k_param = jax.random.split(key, 3)

    IN_FEATS, H_FEATS = 16, 32
    params = init_params(k_param, IN_FEATS, H_FEATS)

    # --- small graph: exercises the fully-fused single-block fast path.
    N = 16
    adj = (jax.random.uniform(k_graph, (N, N)) < 0.3).astype(jnp.float32)
    adj = adj * (1.0 - jnp.eye(N, dtype=jnp.float32))          # no self loops
    x = jax.random.normal(k_feat, (N, IN_FEATS), jnp.float32)

    out = graphsage_forward(adj, x, params)
    jax.block_until_ready(out)
    ref = _reference(adj, x, params)
    assert out.shape == (N, H_FEATS)
    assert bool(jnp.all(jnp.isfinite(out)))
    assert bool(jnp.max(jnp.abs(out - ref)) < 0.2)

    # --- larger graph: exercises the row-tiled two-pass path (grid over node rows,
    #     includes padded rows since 200 is not a multiple of the 128-row tile).
    k2g, k2f = jax.random.split(jax.random.PRNGKey(1), 2)
    N2 = 200
    adj2 = (jax.random.uniform(k2g, (N2, N2)) < 0.1).astype(jnp.float32)
    adj2 = adj2 * (1.0 - jnp.eye(N2, dtype=jnp.float32))
    x2 = jax.random.normal(k2f, (N2, IN_FEATS), jnp.float32)

    out2 = graphsage_forward(adj2, x2, params, force_tiled=True)
    jax.block_until_ready(out2)
    ref2 = _reference(adj2, x2, params)
    assert out2.shape == (N2, H_FEATS)
    assert bool(jnp.all(jnp.isfinite(out2)))
    assert bool(jnp.max(jnp.abs(out2 - ref2)) < 0.2)

    print("KERNEL_OK")
</pallas_src>

<mosaic_0001>
module attributes {stable_mosaic.version = 11 : i64} {
  func.func @_graphsage_fused_kernel(%arg0: memref<16x16xbf16, #tpu.memory_space<vmem>>, %arg1: memref<16x128xbf16, #tpu.memory_space<vmem>>, %arg2: memref<16x1xf32, #tpu.memory_space<vmem>>, %arg3: memref<128x128xbf16, #tpu.memory_space<vmem>>, %arg4: memref<128x128xbf16, #tpu.memory_space<vmem>>, %arg5: memref<1x128xf32, #tpu.memory_space<vmem>>, %arg6: memref<128x128xbf16, #tpu.memory_space<vmem>>, %arg7: memref<128x128xbf16, #tpu.memory_space<vmem>>, %arg8: memref<1x128xf32, #tpu.memory_space<vmem>>, %arg9: memref<16x128xf32, #tpu.memory_space<vmem>>) attributes {dimension_semantics = [], scalar_prefetch = 0 : i64, scratch_operands = 0 : i64, tpu.core_type = #tpu.core_type<tc>} {
    %c0 = arith.constant 0 : index
    %c0_0 = arith.constant 0 : index
    %0 = vector.load %arg0[%c0, %c0_0] : memref<16x16xbf16, #tpu.memory_space<vmem>>, vector<16x16xbf16>
    %c0_1 = arith.constant 0 : index
    %c0_2 = arith.constant 0 : index
    %1 = vector.load %arg1[%c0_1, %c0_2] : memref<16x128xbf16, #tpu.memory_space<vmem>>, vector<16x128xbf16>
    %c0_3 = arith.constant 0 : index
    %c0_4 = arith.constant 0 : index
    %2 = vector.load %arg2[%c0_3, %c0_4] : memref<16x1xf32, #tpu.memory_space<vmem>>, vector<16x1xf32>
    %cst = arith.constant dense<0.000000e+00> : vector<16x128xf32>
    %3 = tpu.matmul %0, %1, %cst {dimension_numbers = #tpu.dot_dimension_numbers<[1], [0], [0], [1], [0, 0, 1, 1], [], []>} : vector<16x16xbf16>, vector<16x128xbf16>, vector<16x128xf32> -> vector<16x128xf32>
    %4 = vector.broadcast %2 : vector<16x1xf32> to vector<16x128xf32>
    %5 = arith.mulf %3, %4 : vector<16x128xf32>
    %c0_5 = arith.constant 0 : index
    %c0_6 = arith.constant 0 : index
    %6 = vector.load %arg3[%c0_5, %c0_6] : memref<128x128xbf16, #tpu.memory_space<vmem>>, vector<128x128xbf16>
    %cst_7 = arith.constant dense<0.000000e+00> : vector<16x128xf32>
    %7 = tpu.matmul %1, %6, %cst_7 {dimension_numbers = #tpu.dot_dimension_numbers<[1], [0], [0], [1], [0, 0, 1, 1], [], []>} : vector<16x128xbf16>, vector<128x128xbf16>, vector<16x128xf32> -> vector<16x128xf32>
    %8 = arith.truncf %5 : vector<16x128xf32> to vector<16x128xbf16>
    %c0_8 = arith.constant 0 : index
    %c0_9 = arith.constant 0 : index
    %9 = vector.load %arg4[%c0_8, %c0_9] : memref<128x128xbf16, #tpu.memory_space<vmem>>, vector<128x128xbf16>
    %cst_10 = arith.constant dense<0.000000e+00> : vector<16x128xf32>
    %10 = tpu.matmul %8, %9, %cst_10 {dimension_numbers = #tpu.dot_dimension_numbers<[1], [0], [0], [1], [0, 0, 1, 1], [], []>} : vector<16x128xbf16>, vector<128x128xbf16>, vector<16x128xf32> -> vector<16x128xf32>
    %11 = arith.addf %7, %10 : vector<16x128xf32>
    %c0_11 = arith.constant 0 : index
    %c0_12 = arith.constant 0 : index
    %12 = vector.load %arg5[%c0_11, %c0_12] : memref<1x128xf32, #tpu.memory_space<vmem>>, vector<1x128xf32>
    %13 = vector.broadcast %12 : vector<1x128xf32> to vector<16x128xf32>
    %14 = arith.addf %11, %13 : vector<16x128xf32>
    %cst_13 = arith.constant 0.000000e+00 : f32
    %15 = vector.broadcast %cst_13 : f32 to vector<16x128xf32>
    %16 = arith.maximumf %14, %15 : vector<16x128xf32>
    %17 = arith.truncf %16 : vector<16x128xf32> to vector<16x128xbf16>
    %cst_14 = arith.constant dense<0.000000e+00> : vector<16x128xf32>
    %18 = tpu.matmul %0, %17, %cst_14 {dimension_numbers = #tpu.dot_dimension_numbers<[1], [0], [0], [1], [0, 0, 1, 1], [], []>} : vector<16x16xbf16>, vector<16x128xbf16>, vector<16x128xf32> -> vector<16x128xf32>
    %19 = vector.broadcast %2 : vector<16x1xf32> to vector<16x128xf32>
    %20 = arith.mulf %18, %19 : vector<16x128xf32>
    %c0_15 = arith.constant 0 : index
    %c0_16 = arith.constant 0 : index
    %21 = vector.load %arg6[%c0_15, %c0_16] : memref<128x128xbf16, #tpu.memory_space<vmem>>, vector<128x128xbf16>
    %cst_17 = arith.constant dense<0.000000e+00> : vector<16x128xf32>
    %22 = tpu.matmul %17, %21, %cst_17 {dimension_numbers = #tpu.dot_dimension_numbers<[1], [0], [0], [1], [0, 0, 1, 1], [], []>} : vector<16x128xbf16>, vector<128x128xbf16>, vector<16x128xf32> -> vector<16x128xf32>
    %23 = arith.truncf %20 : vector<16x128xf32> to vector<16x128xbf16>
    %c0_18 = arith.constant 0 : index
    %c0_19 = arith.constant 0 : index
    %24 = vector.load %arg7[%c0_18, %c0_19] : memref<128x128xbf16, #tpu.memory_space<vmem>>, vector<128x128xbf16>
    %cst_20 = arith.constant dense<0.000000e+00> : vector<16x128xf32>
    %25 = tpu.matmul %23, %24, %cst_20 {dimension_numbers = #tpu.dot_dimension_numbers<[1], [0], [0], [1], [0, 0, 1, 1], [], []>} : vector<16x128xbf16>, vector<128x128xbf16>, vector<16x128xf32> -> vector<16x128xf32>
    %26 = arith.addf %22, %25 : vector<16x128xf32>
    %c0_21 = arith.constant 0 : index
    %c0_22 = arith.constant 0 : index
    %27 = vector.load %arg8[%c0_21, %c0_22] : memref<1x128xf32, #tpu.memory_space<vmem>>, vector<1x128xf32>
    %28 = vector.broadcast %27 : vector<1x128xf32> to vector<16x128xf32>
    %29 = arith.addf %26, %28 : vector<16x128xf32>
    %c0_23 = arith.constant 0 : index
    %c0_24 = arith.constant 0 : index
    %30 = vector.load %arg9[%c0_23, %c0_24] : memref<16x128xf32, #tpu.memory_space<vmem>>, vector<16x128xf32>
    tpu.vector_store %arg9[%c0_23, %c0_24], %29 {strides = array<i32>} : memref<16x128xf32, #tpu.memory_space<vmem>>, vector<16x128xf32>,
    return
  }
}

</mosaic_0001>

<llo_original>
// kernel: tpu_custom_call.1
$region0: #{tpu_custom_call.1}
  #allocation0 [shape = 'u32[]', space=smem, size = 0x4, offset = 0x4, fixed_abs, tag = 'smem constant byte address 0x4 - core index']
  #allocation1 [shape = 'u32[144,128]{1,0:T(1,128)}', space=vmem, size = 0x12000, scoped, tag = 'internal scratch']
  %s0 = inlined_call_operand.vmem [shape: bf16[16,16], index: 0, kind: input, shape index: {}]
  %s1 = inlined_call_operand.vmem [shape: bf16[16,128], index: 1, kind: input, shape index: {}]
  %s2 = inlined_call_operand.vmem [shape: f32[16,1], index: 2, kind: input, shape index: {}]
  %s3 = inlined_call_operand.hbm [shape: bf16[128,128], index: 3, kind: input, shape index: {}]
  %s4 = inlined_call_operand.hbm [shape: bf16[128,128], index: 4, kind: input, shape index: {}]
  %s5 = inlined_call_operand.vmem [shape: f32[1,128], index: 5, kind: input, shape index: {}]
  %s6 = inlined_call_operand.hbm [shape: bf16[128,128], index: 6, kind: input, shape index: {}]
  %s7 = inlined_call_operand.hbm [shape: bf16[128,128], index: 7, kind: input, shape index: {}]
  %s8 = inlined_call_operand.vmem [shape: f32[1,128], index: 8, kind: input, shape index: {}]
  %s9 = inlined_call_operand.hbm [shape: f32[16,128], index: 9, kind: output, shape index: {}]
  %s10 = sld [smem:[#allocation0]]
  $region62: #{tpu_custom_call.1} parent=0
    _
  %s12 = ssub.s32 1, %s10
  %s13 = scalar_select 0, %s12, %s10
  $region1: #{tpu_custom_call.1} parent=0
    #allocation2 [shape = 'u8[32768]{0}', space=vmem, size = 0x8000, scoped, tag = 'input window, operand 3, single buffered']
    #allocation3 [shape = 's32[1]{0}', space=sflag, size = 0x4, scoped, tag = 'scoped memory for tpu_custom_call.1']
    #allocation4 [shape = 's32[1]{0}', space=sflag, size = 0x4, scoped, tag = 'scoped memory for tpu_custom_call.1']
    #allocation5 [shape = 'u8[32768]{0}', space=vmem, size = 0x8000, scoped, tag = 'input window, operand 4, single buffered']
    #allocation6 [shape = 's32[1]{0}', space=sflag, size = 0x4, scoped, tag = 'scoped memory for tpu_custom_call.1']
    #allocation7 [shape = 'u8[32768]{0}', space=vmem, size = 0x8000, scoped, tag = 'input window, operand 6, single buffered']
    #allocation8 [shape = 'u8[32768]{0}', space=vmem, size = 0x8000, scoped, tag = 'input window, operand 7, single buffered']
    #allocation9 [shape = 's32[1]{0}', space=sflag, size = 0x4, scoped, tag = 'scoped memory for tpu_custom_call.1']
    #allocation10 [shape = 'u8[8192]{0}', space=vmem, size = 0x2000, scoped, tag = 'output window, operand 0, single buffered']
    %14 = vsyncpa [#allocation3], 0
    %15 = vsyncpa [#allocation6], 0
    %16 = vsyncpa [#allocation9], 0
    %17 = vsyncpa [#allocation4], 0
    // Predicated region
    $region2: #{tpu_custom_call.1} parent=1 // pred_check
      _
    $region3: #{tpu_custom_call.1} parent=1 // pred_check_branch
      %19 = sbr.rel (0) target = $region5
    $region4: #{tpu_custom_call.1} parent=1 // pred_region
      _
    $region5: #{tpu_custom_call.1} parent=1 // pred_fallthru
      _
    // Predicated region
    $region6: #{tpu_custom_call.1} parent=1 // pred_check
      _
    $region7: #{tpu_custom_call.1} parent=1 // pred_check_branch
      %21 = sbr.rel (0) target = $region9
    $region8: #{tpu_custom_call.1} parent=1 // pred_region
      _
    $region9: #{tpu_custom_call.1} parent=1 // pred_fallthru
      _
    // Predicated region
    $region10: #{tpu_custom_call.1} parent=1 // pred_check
      _
    $region11: #{tpu_custom_call.1} parent=1 // pred_check_branch
      %23 = sbr.rel (0) target = $region13
    $region12: #{tpu_custom_call.1} parent=1 // pred_region
      _
    $region13: #{tpu_custom_call.1} parent=1 // pred_fallthru
      _
    // Predicated region
    $region14: #{tpu_custom_call.1} parent=1 // pred_check
      _
    $region15: #{tpu_custom_call.1} parent=1 // pred_check_branch
      %25 = sbr.rel (0) target = $region17
    $region16: #{tpu_custom_call.1} parent=1 // pred_region
      %s27 = ssub.s32 1024, 1024
      %28 = vsyncadd [#allocation3], %s27
      %s29 = sshll.u32 [#allocation2], 4
      %s30 = int_to_ptr.vmem [resolvable:$true] %s29
      %35 = dma.hbm_to_vmem [thread:$0]  %s3, 1024, %s30, [#allocation3], 64, 64, 4
    $region17: #{tpu_custom_call.1} parent=1 // pred_fallthru
      _
    // Predicated region
    $region18: #{tpu_custom_call.1} parent=1 // pred_check
      _
    $region19: #{tpu_custom_call.1} parent=1 // pred_check_branch
      %37 = sbr.rel (0) target = $region21
    $region20: #{tpu_custom_call.1} parent=1 // pred_region
      %s39 = ssub.s32 1024, 1024
      %40 = vsyncadd [#allocation6], %s39
      %s41 = sshll.u32 [#allocation5], 4
      %s42 = int_to_ptr.vmem [resolvable:$true] %s41
      %47 = dma.hbm_to_vmem [thread:$0]  %s4, 1024, %s42, [#allocation6], 64, 64, 4
    $region21: #{tpu_custom_call.1} parent=1 // pred_fallthru
      _
    // Predicated region
    $region22: #{tpu_custom_call.1} parent=1 // pred_check
      _
    $region23: #{tpu_custom_call.1} parent=1 // pred_check_branch
      %49 = sbr.rel (0) target = $region25
    $region24: #{tpu_custom_call.1} parent=1 // pred_region
      _
    $region25: #{tpu_custom_call.1} parent=1 // pred_fallthru
      _
    // Predicated region
    $region26: #{tpu_custom_call.1} parent=1 // pred_check
      _
    $region27: #{tpu_custom_call.1} parent=1 // pred_check_branch
      %51 = sbr.rel (0) target = $region29
    $region28: #{tpu_custom_call.1} parent=1 // pred_region
      %s53 = ssub.s32 1024, 1024
      %54 = vsyncadd [#allocation6], %s53
      %s55 = sshll.u32 [#allocation7], 4
      %s56 = int_to_ptr.vmem [resolvable:$true] %s55
      %61 = dma.hbm_to_vmem [thread:$0]  %s6, 1024, %s56, [#allocation6], 64, 64, 4
    $region29: #{tpu_custom_call.1} parent=1 // pred_fallthru
      _
    // Predicated region
    $region30: #{tpu_custom_call.1} parent=1 // pred_check
      _
    $region31: #{tpu_custom_call.1} parent=1 // pred_check_branch
      %63 = sbr.rel (0) target = $region33
    $region32: #{tpu_custom_call.1} parent=1 // pred_region
      %s65 = ssub.s32 1024, 1024
      %66 = vsyncadd [#allocation9], %s65
      %s67 = sshll.u32 [#allocation8], 4
      %s68 = int_to_ptr.vmem [resolvable:$true] %s67
      %73 = dma.hbm_to_vmem [thread:$0]  %s7, 1024, %s68, [#allocation9], 64, 64, 4
    $region33: #{tpu_custom_call.1} parent=1 // pred_fallthru
      _
    // Predicated region
    $region34: #{tpu_custom_call.1} parent=1 // pred_check
      _
    $region35: #{tpu_custom_call.1} parent=1 // pred_check_branch
      %75 = sbr.rel (0) target = $region37
    $region36: #{tpu_custom_call.1} parent=1 // pred_region
      _
    $region37: #{tpu_custom_call.1} parent=1 // pred_fallthru
      _
    // Predicated region
    $region38: #{tpu_custom_call.1} parent=1 // pred_check
      _
    $region39: #{tpu_custom_call.1} parent=1 // pred_check_branch
      %77 = sbr.rel (0) target = $region41
    $region40: #{tpu_custom_call.1} parent=1 // pred_region
      %78 = dma.done [#allocation3], 1024
    $region41: #{tpu_custom_call.1} parent=1 // pred_fallthru
      _
    // Predicated region
    $region42: #{tpu_custom_call.1} parent=1 // pred_check
      _
    $region43: #{tpu_custom_call.1} parent=1 // pred_check_branch
      %80 = sbr.rel (0) target = $region45
    $region44: #{tpu_custom_call.1} parent=1 // pred_region
      %81 = dma.done [#allocation6], 1024
    $region45: #{tpu_custom_call.1} parent=1 // pred_fallthru
      _
    // Predicated region
    $region46: #{tpu_custom_call.1} parent=1 // pred_check
      _
    $region47: #{tpu_custom_call.1} parent=1 // pred_check_branch
      %83 = sbr.rel (0) target = $region49
    $region48: #{tpu_custom_call.1} parent=1 // pred_region
      %84 = dma.done [#allocation6], 1024
    $region49: #{tpu_custom_call.1} parent=1 // pred_fallthru
      _
    // Predicated region
    $region50: #{tpu_custom_call.1} parent=1 // pred_check
      _
    $region51: #{tpu_custom_call.1} parent=1 // pred_check_branch
      %86 = sbr.rel (0) target = $region53
    $region52: #{tpu_custom_call.1} parent=1 // pred_region
      %87 = dma.done [#allocation9], 1024
    $region53: #{tpu_custom_call.1} parent=1 // pred_fallthru
      _
    %v89 = vld [vmem:[%s0] sm:$0xf]
    %v90 = vld [vmem:[%s0 + $0x4] sm:$0xf]
    %v91 = vld [vmem:[%s1] sm:$0xf]
    %v92 = vld [vmem:[%s1 + $0x4] sm:$0xf]
    %v93 = vld [vmem:[%s2] sm:$0xff]
    %v94 = vld [vmem:[%s2 + $0x8] sm:$0xff]
    %v97 = vunpack.c.l.b16 %v89
    %v98 = vunpack.c.l.b16 %v90
    %v99 = vpack.c.b16 %v98, %v97
    %v102 = vunpack.c.l.b16 %v91
    %v103 = vunpack.c.l.b16 %v92
    %v104 = vpack.c.b16 %v103, %v102
    %vm106 = vcmask 130048
    %v108 = vsel %vm106, %v99, 0
    %110 = vmatprep.subr.bf16.mxu0 0
    %111 = vmatpush1.bf16.msra.mxu0 0
    %112 = vmatprep.subr.bf16.mxu0 0
    %113 = vmatpush1.bf16.msra.mxu0 0
    %114 = vmatprep.subr.bf16.mxu0 0
    %115 = vmatpush1.bf16.msra.mxu0 0
    %116 = vmatprep.subr.bf16.mxu0 0
    %117 = vmatpush1.bf16.msra.mxu0 0
    %118 = vmatprep.subr.bf16.mxu0 0
    %119 = vmatpush1.bf16.msra.mxu0 0
    %120 = vmatprep.subr.bf16.mxu0 0
    %121 = vmatpush1.bf16.msra.mxu0 0
    %122 = vmatprep.subr.bf16.mxu0 0
    %123 = vmatpush1.bf16.msra.mxu0 0
    %124 = vmatprep.subr.bf16.mxu0 0
    %125 = vmatpush1.bf16.msra.mxu0 %v104
    %126 = vmatprep.subr.bf16.mxu0 0
    %127 = vmatpush2.bf16.msra.mxu0 0
    %128 = vmatprep.subr.bf16.mxu0 0
    %129 = vmatpush2.bf16.msra.mxu0 0
    %130 = vmatprep.subr.bf16.mxu0 0
    %131 = vmatpush2.bf16.msra.mxu0 0
    %132 = vmatprep.subr.bf16.mxu0 0
    %133 = vmatpush2.bf16.msra.mxu0 0
    %134 = vmatprep.subr.bf16.mxu0 0
    %135 = vmatpush2.bf16.msra.mxu0 0
    %136 = vmatprep.subr.bf16.mxu0 0
    %137 = vmatpush2.bf16.msra.mxu0 0
    %138 = vmatprep.subr.bf16.mxu0 0
    %139 = vmatpush2.bf16.msra.mxu0 0
    %140 = vmatprep.subr.bf16.mxu0 0
    %141 = vmatpush2.bf16.msra.mxu0 0
    %142 = vmatprep.mubr.bf16.mxu0 0
    %143 = vmatmul.mubr.bf16.gmra.mxu0 %v108
    %v144 = vpop.f32.mrf.mxu0
    %v145 = vadd.f32 0.0, %v144
    %v146 = vpop.f32.mrf.mxu0
    %v147 = vpop.f32.mrf.mxu0
    %v148 = vadd.f32 0.0, %v147
    %v149 = vpop.f32.mrf.mxu0
    %150 = vdwg.mxu0
    %152 = vset.pattern.permute.xlu0 0
    %153 = vperm.xlu0 %152, %v93
    %v154 = vpop.permute.xlu0 %153
    %157 = vset.pattern.permute.xlu0 0
    %158 = vperm.xlu0 %157, %v94
    %v159 = vpop.permute.xlu0 %158
    %v161 = vmul.f32 %v145, %v154
    %v162 = vmul.f32 %v148, %v159
    %v163 = vld [vmem:[#allocation2] sm:$0xf]
    %v164 = vld [vmem:[#allocation2 + $0x4] sm:$0xf]
    %v165 = vld [vmem:[#allocation2 + $0x8] sm:$0xf]
    %v166 = vld [vmem:[#allocation2 + $0xc] sm:$0xf]
    %v167 = vld [vmem:[#allocation2 + $0x10] sm:$0xf]
    %v168 = vld [vmem:[#allocation2 + $0x14] sm:$0xf]
    %v169 = vld [vmem:[#allocation2 + $0x18] sm:$0xf]
    %v170 = vld [vmem:[#allocation2 + $0x1c] sm:$0xf]
    %v171 = vld [vmem:[#allocation2 + $0x20] sm:$0xf]
    %v172 = vld [vmem:[#allocation2 + $0x24] sm:$0xf]
    %v173 = vld [vmem:[#allocation2 + $0x28] sm:$0xf]
    %v174 = vld [vmem:[#allocation2 + $0x2c] sm:$0xf]
    %v175 = vld [vmem:[#allocation2 + $0x30] sm:$0xf]
    %v176 = vld [vmem:[#allocation2 + $0x34] sm:$0xf]
    %v177 = vld [vmem:[#allocation2 + $0x38] sm:$0xf]
    %v178 = vld [vmem:[#allocation2 + $0x3c] sm:$0xf]
    %v179 = vpack.c.bf16 %v162, %v161
    %v180 = vld [vmem:[#allocation5] sm:$0xf]
    %v181 = vld [vmem:[#allocation5 + $0x4] sm:$0xf]
    %v182 = vld [vmem:[#allocation5 + $0x8] sm:$0xf]
    %v183 = vld [vmem:[#allocation5 + $0xc] sm:$0xf]
    %v184 = vld [vmem:[#allocation5 + $0x10] sm:$0xf]
    %v185 = vld [vmem:[#allocation5 + $0x14] sm:$0xf]
    %v186 = vld [vmem:[#allocation5 + $0x18] sm:$0xf]
    %v187 = vld [vmem:[#allocation5 + $0x1c] sm:$0xf]
    %v188 = vld [vmem:[#allocation5 + $0x20] sm:$0xf]
    %v189 = vld [vmem:[#allocation5 + $0x24] sm:$0xf]
    %v190 = vld [vmem:[#allocation5 + $0x28] sm:$0xf]
    %v191 = vld [vmem:[#allocation5 + $0x2c] sm:$0xf]
    %v192 = vld [vmem:[#allocation5 + $0x30] sm:$0xf]
    %v193 = vld [vmem:[#allocation5 + $0x34] sm:$0xf]
    %v194 = vld [vmem:[#allocation5 + $0x38] sm:$0xf]
    %v195 = vld [vmem:[#allocation5 + $0x3c] sm:$0xf]
    %v212 = vunpack.c.l.b16 %v180
    %v213 = vunpack.c.l.b16 %v181
    %v214 = vunpack.c.l.b16 %v182
    %v215 = vunpack.c.l.b16 %v183
    %v216 = vunpack.c.l.b16 %v184
    %v217 = vunpack.c.l.b16 %v185
    %v218 = vunpack.c.l.b16 %v186
    %v219 = vunpack.c.l.b16 %v187
    %v220 = vunpack.c.l.b16 %v188
    %v221 = vunpack.c.l.b16 %v189
    %v222 = vunpack.c.l.b16 %v190
    %v223 = vunpack.c.l.b16 %v191
    %v224 = vunpack.c.l.b16 %v192
    %v225 = vunpack.c.l.b16 %v193
    %v226 = vunpack.c.l.b16 %v194
    %v227 = vunpack.c.l.b16 %v195
    %v228 = vpack.c.b16 %v213, %v212
    %v229 = vpack.c.b16 %v215, %v214
    %v230 = vpack.c.b16 %v217, %v216
    %v231 = vpack.c.b16 %v219, %v218
    %v232 = vpack.c.b16 %v221, %v220
    %v233 = vpack.c.b16 %v223, %v222
    %v234 = vpack.c.b16 %v225, %v224
    %v235 = vpack.c.b16 %v227, %v226
    %244 = vmatprep.subr.bf16.mxu0 0
    %245 = vmatpush1.bf16.msra.mxu0 %v235
    %246 = vmatprep.subr.bf16.mxu0 0
    %247 = vmatpush1.bf16.msra.mxu0 %v234
    %248 = vmatprep.subr.bf16.mxu0 0
    %249 = vmatpush1.bf16.msra.mxu0 %v233
    %250 = vmatprep.subr.bf16.mxu0 0
    %251 = vmatpush1.bf16.msra.mxu0 %v232
    %252 = vmatprep.subr.bf16.mxu0 0
    %253 = vmatpush1.bf16.msra.mxu0 %v231
    %254 = vmatprep.subr.bf16.mxu0 0
    %255 = vmatpush1.bf16.msra.mxu0 %v230
    %256 = vmatprep.subr.bf16.mxu0 0
    %257 = vmatpush1.bf16.msra.mxu0 %v229
    %258 = vmatprep.subr.bf16.mxu0 0
    %259 = vmatpush1.bf16.msra.mxu0 %v228
    %260 = vmatprep.subr.bf16.mxu0 0
    %261 = vmatpush2.bf16.msra.mxu0 0
    %262 = vmatprep.subr.bf16.mxu0 0
    %263 = vmatpush2.bf16.msra.mxu0 0
    %264 = vmatprep.subr.bf16.mxu0 0
    %265 = vmatpush2.bf16.msra.mxu0 0
    %266 = vmatprep.subr.bf16.mxu0 0
    %267 = vmatpush2.bf16.msra.mxu0 0
    %268 = vmatprep.subr.bf16.mxu0 0
    %269 = vmatpush2.bf16.msra.mxu0 0
    %270 = vmatprep.subr.bf16.mxu0 0
    %271 = vmatpush2.bf16.msra.mxu0 0
    %272 = vmatprep.subr.bf16.mxu0 0
    %273 = vmatpush2.bf16.msra.mxu0 0
    %274 = vmatprep.subr.bf16.mxu0 0
    %275 = vmatpush2.bf16.msra.mxu0 0
    %276 = vmatprep.mubr.bf16.mxu0 0
    %277 = vmatmul.mubr.bf16.gmra.mxu0 %v179
    %v278 = vpop.f32.mrf.mxu0
    %v279 = vadd.f32 0.0, %v278
    %v280 = vpop.f32.mrf.mxu0
    %v281 = vpop.f32.mrf.mxu0
    %v282 = vadd.f32 0.0, %v281
    %v283 = vpop.f32.mrf.mxu0
    %284 = vdwg.mxu0
    %v301 = vunpack.c.l.b16 %v163
    %v302 = vunpack.c.l.b16 %v164
    %v303 = vunpack.c.l.b16 %v165
    %v304 = vunpack.c.l.b16 %v166
    %v305 = vunpack.c.l.b16 %v167
    %v306 = vunpack.c.l.b16 %v168
    %v307 = vunpack.c.l.b16 %v169
    %v308 = vunpack.c.l.b16 %v170
    %v309 = vunpack.c.l.b16 %v171
    %v310 = vunpack.c.l.b16 %v172
    %v311 = vunpack.c.l.b16 %v173
    %v312 = vunpack.c.l.b16 %v174
    %v313 = vunpack.c.l.b16 %v175
    %v314 = vunpack.c.l.b16 %v176
    %v315 = vunpack.c.l.b16 %v177
    %v316 = vunpack.c.l.b16 %v178
    %v317 = vpack.c.b16 %v302, %v301
    %v318 = vpack.c.b16 %v304, %v303
    %v319 = vpack.c.b16 %v306, %v305
    %v320 = vpack.c.b16 %v308, %v307
    %v321 = vpack.c.b16 %v310, %v309
    %v322 = vpack.c.b16 %v312, %v311
    %v323 = vpack.c.b16 %v314, %v313
    %v324 = vpack.c.b16 %v316, %v315
    %333 = vmatprep.subr.bf16.mxu0 0
    %334 = vmatpush1.bf16.msra.mxu0 %v324
    %335 = vmatprep.subr.bf16.mxu0 0
    %336 = vmatpush1.bf16.msra.mxu0 %v323
    %337 = vmatprep.subr.bf16.mxu0 0
    %338 = vmatpush1.bf16.msra.mxu0 %v322
    %339 = vmatprep.subr.bf16.mxu0 0
    %340 = vmatpush1.bf16.msra.mxu0 %v321
    %341 = vmatprep.subr.bf16.mxu0 0
    %342 = vmatpush1.bf16.msra.mxu0 %v320
    %343 = vmatprep.subr.bf16.mxu0 0
    %344 = vmatpush1.bf16.msra.mxu0 %v319
    %345 = vmatprep.subr.bf16.mxu0 0
    %346 = vmatpush1.bf16.msra.mxu0 %v318
    %347 = vmatprep.subr.bf16.mxu0 0
    %348 = vmatpush1.bf16.msra.mxu0 %v317
    %349 = vmatprep.subr.bf16.mxu0 0
    %350 = vmatpush2.bf16.msra.mxu0 0
    %351 = vmatprep.subr.bf16.mxu0 0
    %352 = vmatpush2.bf16.msra.mxu0 0
    %353 = vmatprep.subr.bf16.mxu0 0
    %354 = vmatpush2.bf16.msra.mxu0 0
    %355 = vmatprep.subr.bf16.mxu0 0
    %356 = vmatpush2.bf16.msra.mxu0 0
    %357 = vmatprep.subr.bf16.mxu0 0
    %358 = vmatpush2.bf16.msra.mxu0 0
    %359 = vmatprep.subr.bf16.mxu0 0
    %360 = vmatpush2.bf16.msra.mxu0 0
    %361 = vmatprep.subr.bf16.mxu0 0
    %362 = vmatpush2.bf16.msra.mxu0 0
    %363 = vmatprep.subr.bf16.mxu0 0
    %364 = vmatpush2.bf16.msra.mxu0 0
    %365 = vmatprep.mubr.bf16.mxu0 0
    %366 = vmatmul.mubr.bf16.gmra.mxu0 %v104
    %v367 = vpop.f32.mrf.mxu0
    %v368 = vadd.f32 %v279, %v367
    %v369 = vpop.f32.mrf.mxu0
    %v370 = vpop.f32.mrf.mxu0
    %v371 = vadd.f32 %v282, %v370
    %v372 = vpop.f32.mrf.mxu0
    %373 = vdwg.mxu0
    %v374 = vld [vmem:[%s5] sm:$0x1]
    %v376 = vlaneseq
    %v377 = vshrl.u32 %v376, 7
    %v378 = vsub.s32 0, %v377
    %v379 = vrot.slane %v374, %v378
    %v381 = vadd.f32 %v368, %v379
    %v382 = vadd.f32 %v371, %v379
    %v383 = vmax.f32 %v381, 0.0
    %v384 = vmax.f32 %v382, 0.0
    %v385 = vpack.c.bf16 %v384, %v383
    %386 = vmatprep.subr.bf16.mxu0 0
    %387 = vmatpush1.bf16.msra.mxu0 0
    %388 = vmatprep.subr.bf16.mxu0 0
    %389 = vmatpush1.bf16.msra.mxu0 0
    %390 = vmatprep.subr.bf16.mxu0 0
    %391 = vmatpush1.bf16.msra.mxu0 0
    %392 = vmatprep.subr.bf16.mxu0 0
    %393 = vmatpush1.bf16.msra.mxu0 0
    %394 = vmatprep.subr.bf16.mxu0 0
    %395 = vmatpush1.bf16.msra.mxu0 0
    %396 = vmatprep.subr.bf16.mxu0 0
    %397 = vmatpush1.bf16.msra.mxu0 0
    %398 = vmatprep.subr.bf16.mxu0 0
    %399 = vmatpush1.bf16.msra.mxu0 0
    %400 = vmatprep.subr.bf16.mxu0 0
    %401 = vmatpush1.bf16.msra.mxu0 %v385
    %402 = vmatprep.subr.bf16.mxu0 0
    %403 = vmatpush2.bf16.msra.mxu0 0
    %404 = vmatprep.subr.bf16.mxu0 0
    %405 = vmatpush2.bf16.msra.mxu0 0
    %406 = vmatprep.subr.bf16.mxu0 0
    %407 = vmatpush2.bf16.msra.mxu0 0
    %408 = vmatprep.subr.bf16.mxu0 0
    %409 = vmatpush2.bf16.msra.mxu0 0
    %410 = vmatprep.subr.bf16.mxu0 0
    %411 = vmatpush2.bf16.msra.mxu0 0
    %412 = vmatprep.subr.bf16.mxu0 0
    %413 = vmatpush2.bf16.msra.mxu0 0
    %414 = vmatprep.subr.bf16.mxu0 0
    %415 = vmatpush2.bf16.msra.mxu0 0
    %416 = vmatprep.subr.bf16.mxu0 0
    %417 = vmatpush2.bf16.msra.mxu0 0
    %418 = vmatprep.mubr.bf16.mxu0 0
    %419 = vmatmul.mubr.bf16.gmra.mxu0 %v108
    %v420 = vpop.f32.mrf.mxu0
    %v421 = vadd.f32 0.0, %v420
    %v422 = vpop.f32.mrf.mxu0
    %v423 = vpop.f32.mrf.mxu0
    %v424 = vadd.f32 0.0, %v423
    %v425 = vpop.f32.mrf.mxu0
    %426 = vdwg.mxu0
    %v427 = vmul.f32 %v421, %v154
    %v428 = vmul.f32 %v424, %v159
    %v429 = vld [vmem:[#allocation7] sm:$0xf]
    %v430 = vld [vmem:[#allocation7 + $0x4] sm:$0xf]
    %v431 = vld [vmem:[#allocation7 + $0x8] sm:$0xf]
    %v432 = vld [vmem:[#allocation7 + $0xc] sm:$0xf]
    %v433 = vld [vmem:[#allocation7 + $0x10] sm:$0xf]
    %v434 = vld [vmem:[#allocation7 + $0x14] sm:$0xf]
    %v435 = vld [vmem:[#allocation7 + $0x18] sm:$0xf]
    %v436 = vld [vmem:[#allocation7 + $0x1c] sm:$0xf]
    %v437 = vld [vmem:[#allocation7 + $0x20] sm:$0xf]
    %v438 = vld [vmem:[#allocation7 + $0x24] sm:$0xf]
    %v439 = vld [vmem:[#allocation7 + $0x28] sm:$0xf]
    %v440 = vld [vmem:[#allocation7 + $0x2c] sm:$0xf]
    %v441 = vld [vmem:[#allocation7 + $0x30] sm:$0xf]
    %v442 = vld [vmem:[#allocation7 + $0x34] sm:$0xf]
    %v443 = vld [vmem:[#allocation7 + $0x38] sm:$0xf]
    %v444 = vld [vmem:[#allocation7 + $0x3c] sm:$0xf]
    %v445 = vpack.c.bf16 %v428, %v427
    %v446 = vld [vmem:[#allocation8] sm:$0xf]
    %v447 = vld [vmem:[#allocation8 + $0x4] sm:$0xf]
    %v448 = vld [vmem:[#allocation8 + $0x8] sm:$0xf]
    %v449 = vld [vmem:[#allocation8 + $0xc] sm:$0xf]
    %v450 = vld [vmem:[#allocation8 + $0x10] sm:$0xf]
    %v451 = vld [vmem:[#allocation8 + $0x14] sm:$0xf]
    %v452 = vld [vmem:[#allocation8 + $0x18] sm:$0xf]
    %v453 = vld [vmem:[#allocation8 + $0x1c] sm:$0xf]
    %v454 = vld [vmem:[#allocation8 + $0x20] sm:$0xf]
    %v455 = vld [vmem:[#allocation8 + $0x24] sm:$0xf]
    %v456 = vld [vmem:[#allocation8 + $0x28] sm:$0xf]
    %v457 = vld [vmem:[#allocation8 + $0x2c] sm:$0xf]
    %v458 = vld [vmem:[#allocation8 + $0x30] sm:$0xf]
    %v459 = vld [vmem:[#allocation8 + $0x34] sm:$0xf]
    %v460 = vld [vmem:[#allocation8 + $0x38] sm:$0xf]
    %v461 = vld [vmem:[#allocation8 + $0x3c] sm:$0xf]
    %v478 = vunpack.c.l.b16 %v446
    %v479 = vunpack.c.l.b16 %v447
    %v480 = vunpack.c.l.b16 %v448
    %v481 = vunpack.c.l.b16 %v449
    %v482 = vunpack.c.l.b16 %v450
    %v483 = vunpack.c.l.b16 %v451
    %v484 = vunpack.c.l.b16 %v452
    %v485 = vunpack.c.l.b16 %v453
    %v486 = vunpack.c.l.b16 %v454
    %v487 = vunpack.c.l.b16 %v455
    %v488 = vunpack.c.l.b16 %v456
    %v489 = vunpack.c.l.b16 %v457
    %v490 = vunpack.c.l.b16 %v458
    %v491 = vunpack.c.l.b16 %v459
    %v492 = vunpack.c.l.b16 %v460
    %v493 = vunpack.c.l.b16 %v461
    %v494 = vpack.c.b16 %v479, %v478
    %v495 = vpack.c.b16 %v481, %v480
    %v496 = vpack.c.b16 %v483, %v482
    %v497 = vpack.c.b16 %v485, %v484
    %v498 = vpack.c.b16 %v487, %v486
    %v499 = vpack.c.b16 %v489, %v488
    %v500 = vpack.c.b16 %v491, %v490
    %v501 = vpack.c.b16 %v493, %v492
    %510 = vmatprep.subr.bf16.mxu0 0
    %511 = vmatpush1.bf16.msra.mxu0 %v501
    %512 = vmatprep.subr.bf16.mxu0 0
    %513 = vmatpush1.bf16.msra.mxu0 %v500
    %514 = vmatprep.subr.bf16.mxu0 0
    %515 = vmatpush1.bf16.msra.mxu0 %v499
    %516 = vmatprep.subr.bf16.mxu0 0
    %517 = vmatpush1.bf16.msra.mxu0 %v498
    %518 = vmatprep.subr.bf16.mxu0 0
    %519 = vmatpush1.bf16.msra.mxu0 %v497
    %520 = vmatprep.subr.bf16.mxu0 0
    %521 = vmatpush1.bf16.msra.mxu0 %v496
    %522 = vmatprep.subr.bf16.mxu0 0
    %523 = vmatpush1.bf16.msra.mxu0 %v495
    %524 = vmatprep.subr.bf16.mxu0 0
    %525 = vmatpush1.bf16.msra.mxu0 %v494
    %526 = vmatprep.subr.bf16.mxu0 0
    %527 = vmatpush2.bf16.msra.mxu0 0
    %528 = vmatprep.subr.bf16.mxu0 0
    %529 = vmatpush2.bf16.msra.mxu0 0
    %530 = vmatprep.subr.bf16.mxu0 0
    %531 = vmatpush2.bf16.msra.mxu0 0
    %532 = vmatprep.subr.bf16.mxu0 0
    %533 = vmatpush2.bf16.msra.mxu0 0
    %534 = vmatprep.subr.bf16.mxu0 0
    %535 = vmatpush2.bf16.msra.mxu0 0
    %536 = vmatprep.subr.bf16.mxu0 0
    %537 = vmatpush2.bf16.msra.mxu0 0
    %538 = vmatprep.subr.bf16.mxu0 0
    %539 = vmatpush2.bf16.msra.mxu0 0
    %540 = vmatprep.subr.bf16.mxu0 0
    %541 = vmatpush2.bf16.msra.mxu0 0
    %542 = vmatprep.mubr.bf16.mxu0 0
    %543 = vmatmul.mubr.bf16.gmra.mxu0 %v445
    %v544 = vpop.f32.mrf.mxu0
    %v545 = vadd.f32 0.0, %v544
    %v546 = vpop.f32.mrf.mxu0
    %v547 = vpop.f32.mrf.mxu0
    %v548 = vadd.f32 0.0, %v547
    %v549 = vpop.f32.mrf.mxu0
    %550 = vdwg.mxu0
    %v567 = vunpack.c.l.b16 %v429
    %v568 = vunpack.c.l.b16 %v430
    %v569 = vunpack.c.l.b16 %v431
    %v570 = vunpack.c.l.b16 %v432
    %v571 = vunpack.c.l.b16 %v433
    %v572 = vunpack.c.l.b16 %v434
    %v573 = vunpack.c.l.b16 %v435
    %v574 = vunpack.c.l.b16 %v436
    %v575 = vunpack.c.l.b16 %v437
    %v576 = vunpack.c.l.b16 %v438
    %v577 = vunpack.c.l.b16 %v439
    %v578 = vunpack.c.l.b16 %v440
    %v579 = vunpack.c.l.b16 %v441
    %v580 = vunpack.c.l.b16 %v442
    %v581 = vunpack.c.l.b16 %v443
    %v582 = vunpack.c.l.b16 %v444
    %v583 = vpack.c.b16 %v568, %v567
    %v584 = vpack.c.b16 %v570, %v569
    %v585 = vpack.c.b16 %v572, %v571
    %v586 = vpack.c.b16 %v574, %v573
    %v587 = vpack.c.b16 %v576, %v575
    %v588 = vpack.c.b16 %v578, %v577
    %v589 = vpack.c.b16 %v580, %v579
    %v590 = vpack.c.b16 %v582, %v581
    %599 = vmatprep.subr.bf16.mxu0 0
    %600 = vmatpush1.bf16.msra.mxu0 %v590
    %601 = vmatprep.subr.bf16.mxu0 0
    %602 = vmatpush1.bf16.msra.mxu0 %v589
    %603 = vmatprep.subr.bf16.mxu0 0
    %604 = vmatpush1.bf16.msra.mxu0 %v588
    %605 = vmatprep.subr.bf16.mxu0 0
    %606 = vmatpush1.bf16.msra.mxu0 %v587
    %607 = vmatprep.subr.bf16.mxu0 0
    %608 = vmatpush1.bf16.msra.mxu0 %v586
    %609 = vmatprep.subr.bf16.mxu0 0
    %610 = vmatpush1.bf16.msra.mxu0 %v585
    %611 = vmatprep.subr.bf16.mxu0 0
    %612 = vmatpush1.bf16.msra.mxu0 %v584
    %613 = vmatprep.subr.bf16.mxu0 0
    %614 = vmatpush1.bf16.msra.mxu0 %v583
    %615 = vmatprep.subr.bf16.mxu0 0
    %616 = vmatpush2.bf16.msra.mxu0 0
    %617 = vmatprep.subr.bf16.mxu0 0
    %618 = vmatpush2.bf16.msra.mxu0 0
    %619 = vmatprep.subr.bf16.mxu0 0
    %620 = vmatpush2.bf16.msra.mxu0 0
    %621 = vmatprep.subr.bf16.mxu0 0
    %622 = vmatpush2.bf16.msra.mxu0 0
    %623 = vmatprep.subr.bf16.mxu0 0
    %624 = vmatpush2.bf16.msra.mxu0 0
    %625 = vmatprep.subr.bf16.mxu0 0
    %626 = vmatpush2.bf16.msra.mxu0 0
    %627 = vmatprep.subr.bf16.mxu0 0
    %628 = vmatpush2.bf16.msra.mxu0 0
    %629 = vmatprep.subr.bf16.mxu0 0
    %630 = vmatpush2.bf16.msra.mxu0 0
    %631 = vmatprep.mubr.bf16.mxu0 0
    %632 = vmatmul.mubr.bf16.gmra.mxu0 %v385
    %v633 = vpop.f32.mrf.mxu0
    %v634 = vadd.f32 %v545, %v633
    %v635 = vpop.f32.mrf.mxu0
    %v636 = vpop.f32.mrf.mxu0
    %v637 = vadd.f32 %v548, %v636
    %v638 = vpop.f32.mrf.mxu0
    %639 = vdwg.mxu0
    %v640 = vld [vmem:[%s8] sm:$0x1]
    %v642 = vlaneseq
    %v643 = vshrl.u32 %v642, 7
    %v644 = vsub.s32 0, %v643
    %v645 = vrot.slane %v640, %v644
    %v647 = vadd.f32 %v634, %v645
    %v648 = vadd.f32 %v637, %v645
    %649 = vst [vmem:[#allocation10] sm:$0xff] %v647
    %650 = vst [vmem:[#allocation10 + $0x8] sm:$0xff] %v648
    // Predicated region
    $region54: #{tpu_custom_call.1} parent=1 // pred_check
      _
    $region55: #{tpu_custom_call.1} parent=1 // pred_check_branch
      %652 = sbr.rel (0) target = $region57
    $region56: #{tpu_custom_call.1} parent=1 // pred_region
      %s654 = ssub.s32 256, 256
      %655 = vsyncadd [#allocation4], %s654
      %s656 = sshll.u32 [#allocation10], 4
      %s657 = int_to_ptr.vmem [resolvable:$true] %s656
      %662 = dma.vmem_to_hbm [thread:$0]  %s657, 256, %s9, [#allocation4], 128, 128, 8
    $region57: #{tpu_custom_call.1} parent=1 // pred_fallthru
      _
    // Predicated region
    $region58: #{tpu_custom_call.1} parent=1 // pred_check
      _
    $region59: #{tpu_custom_call.1} parent=1 // pred_check_branch
      %664 = sbr.rel (0) target = $region61
    $region60: #{tpu_custom_call.1} parent=1 // pred_region
      %665 = dma.done [#allocation4], 256
    $region61: #{tpu_custom_call.1} parent=1 // pred_fallthru
      _
    %666 = vsyncpa [#allocation3], 1
    %667 = vsyncpa [#allocation6], 1
    %668 = vsyncpa [#allocation9], 1
    %669 = vsyncpa [#allocation4], 1

</llo_original>
